<compile_context>
chip_gen: v5e
topology: v5e:2x2
jax: 0.10.0
libtpu: 0.0.40
codegen_flags: <defaults>
</compile_context>

<pallas_src>
import jax
import jax.numpy as jnp
from jax.experimental import pallas as pl
from jax.experimental.pallas import tpu as pltpu


def _round_up(a, m):
    return ((a + m - 1) // m) * m


def _pc_attention_kernel(x_ref, w1t_ref, b1_ref, w2t_ref, b2_ref, o_ref):
    # x_ref:   (tb, P, G)  voxel-feature tile (kept in input dtype)
    # w1t_ref: (G, Gr)     Linear1 weight, pre-transposed (Gr = G // reduction)
    # b1_ref:  (1, Gr)
    # w2t_ref: (Gr, G)     Linear2 weight, pre-transposed
    # b2_ref:  (1, G)
    # o_ref:   (tb, G)     sigmoid attention scale for this tile
    x = x_ref[...]                                          # (tb, P, G)

    # Pooling over the points axis (per-row only; safe under ragged last tile).
    # Max is exact in the input dtype; the mean folds the f32 upcast into the
    # reduce so no full-tile f32 copy is kept live.
    pooled_max = jnp.max(x, axis=1)                         # (tb, G)
    inv_p = jnp.float32(1.0 / x.shape[1])
    pooled_mean = jnp.sum(x, axis=1, dtype=jnp.float32) * inv_p   # (tb, G) f32

    w1t = w1t_ref[...]                                      # (G, Gr) stored dtype
    w2t = w2t_ref[...]                                      # (Gr, G) stored dtype
    b1 = b1_ref[...].astype(jnp.float32)                    # (1, Gr)
    b2 = b2_ref[...].astype(jnp.float32)                    # (1, G)

    # Matmul operands in the weight dtype (native bf16 MXU path when the model
    # is bf16); accumulate in f32.
    cdt = w1t.dtype
    h_max = jnp.maximum(
        jnp.dot(pooled_max.astype(cdt), w1t,
                preferred_element_type=jnp.float32) + b1, 0.0)
    h_mean = jnp.maximum(
        jnp.dot(pooled_mean.astype(cdt), w1t,
                preferred_element_type=jnp.float32) + b1, 0.0)

    # mlp(max) + mlp(mean) = (h_max + h_mean) @ W2^T + 2*b2  (one MXU dot saved;
    # exact because ReLU is only at the hidden layer and W2/b2 are shared).
    att = jnp.dot((h_max + h_mean).astype(w2t.dtype), w2t,
                  preferred_element_type=jnp.float32) + 2.0 * b2

    o_ref[...] = jax.nn.sigmoid(att).astype(o_ref.dtype)


def pc_attention(x, w1t, b1, w2t, b2, *, tile_voxels=None,
                 x_block_vmem_budget=24 * 1024 * 1024):
    """Pallas PCAttention forward.

    x:   (n_voxels, n_points, gate_channels)
    w1t: (gate_channels, gate_channels // r)   -- Linear1 weight, transposed
    b1:  (gate_channels // r,)
    w2t: (gate_channels // r, gate_channels)   -- Linear2 weight, transposed
    b2:  (gate_channels,)
    Returns: (n_voxels, gate_channels, 1), matching `scale.permute(0, 2, 1)`.
    """
    n_voxels, n_points, g = x.shape
    gr = w1t.shape[1]

    # ---- voxel-tile selection (mem-bound kernel: make DMA blocks big) -------
    # Padded VMEM footprint of one voxel's (P, G) slab: the last two dims tile
    # to (8, 128); f32 item size used as a conservative cross-dtype bound.
    # NOTE: for G < 128 a packed (n_voxels, P*G/128, 128) layout would remove
    # the lane padding entirely; kept simple here and budgeted for instead.
    per_voxel_bytes = _round_up(n_points, 8) * _round_up(g, 128) * 4

    if tile_voxels is None:
        tb = x_block_vmem_budget // (2 * per_voxel_bytes)   # double-buffered x
        tb = min(max(tb, 8), 1024)
        # keep >= 4 grid tiles when there is enough work so the "parallel"
        # axis shards across TensorCores (v7x megacore)
        tb = min(tb, max(8, _round_up(pl.cdiv(n_voxels, 4), 8)))
    else:
        tb = max(1, int(tile_voxels))

    if tb >= n_voxels:
        tb = n_voxels                       # single full-extent block
    else:
        tb = max(8, (tb // 8) * 8)          # steady-state tiles stay 8-aligned

    grid = (pl.cdiv(n_voxels, tb),)

    # ---- scoped-VMEM sizing ---------------------------------------------
    # Double-buffered x block + double-buffered output block + (tiny) weights,
    # with generous headroom; kept under v7x's 64 MiB physical VMEM for the
    # default budget, and explicitly above v5e's 16 MiB scoped default.
    out_block_bytes = _round_up(tb, 8) * _round_up(g, 128) * 4
    weight_bytes = (_round_up(g, 8) * _round_up(gr, 128)
                    + _round_up(1, 8) * _round_up(gr, 128)
                    + _round_up(gr, 8) * _round_up(g, 128)
                    + _round_up(1, 8) * _round_up(g, 128)) * 4
    need = 2 * tb * per_voxel_bytes + 2 * out_block_bytes + 2 * weight_bytes
    vmem_limit = int(min(max(2 * need + (8 << 20), 32 << 20), 96 << 20))

    b1_2d = b1.reshape(1, gr)
    b2_2d = b2.reshape(1, g)

    scale = pl.pallas_call(
        _pc_attention_kernel,
        out_shape=jax.ShapeDtypeStruct((n_voxels, g), x.dtype),
        grid_spec=pltpu.PrefetchScalarGridSpec(
            num_scalar_prefetch=0,
            grid=grid,
            in_specs=[
                # per-tile slice of x; channels stay lane-dense on the last dim
                pl.BlockSpec((tb, n_points, g), lambda i: (i, 0, 0)),
                # small weights/biases: constant block index (resident in VMEM)
                pl.BlockSpec((g, gr), lambda i: (0, 0)),
                pl.BlockSpec((1, gr), lambda i: (0, 0)),
                pl.BlockSpec((gr, g), lambda i: (0, 0)),
                pl.BlockSpec((1, g), lambda i: (0, 0)),
            ],
            out_specs=pl.BlockSpec((tb, g), lambda i: (i, 0)),
        ),
        compiler_params=pltpu.CompilerParams(
            dimension_semantics=("parallel",),
            vmem_limit_bytes=vmem_limit,
        ),
    )(x, w1t, b1_2d, w2t, b2_2d)

    # permute(0, 2, 1) of the (B, 1, G) attention is a pure reshape of (B, G):
    # no transpose / extra HBM pass.
    return scale.reshape(n_voxels, g, 1)


def pc_attention_ref(x, w1t, b1, w2t, b2):
    """Pure-JAX reference mirroring the PyTorch forward."""
    def mlp(v):
        h = jnp.maximum(v @ w1t + b1, 0.0)
        return h @ w2t + b2

    pooled_max = jnp.max(x, axis=1)               # (B, G)
    pooled_mean = jnp.mean(x, axis=1)             # (B, G)
    att = mlp(pooled_max) + mlp(pooled_mean)
    scale = jax.nn.sigmoid(att)                   # (B, G)  == (B, 1, G) squeezed
    return scale[:, :, None]                      # permute(0, 2, 1) -> (B, G, 1)


if __name__ == "__main__":
    # Small shapes consistent with the module (channel-wise attention layout).
    n_voxels = 16          # "batch" of pillars
    n_points = 16          # pooled axis
    gate_channels = 32
    reduction_rate = 4
    gr = gate_channels // reduction_rate

    key = jax.random.PRNGKey(0)
    kx, kw1, kb1, kw2, kb2 = jax.random.split(key, 5)

    x = jax.random.normal(kx, (n_voxels, n_points, gate_channels),
                          dtype=jnp.float32)
    # Linear weights generated directly in the transposed layout the kernel uses.
    w1t = jax.random.normal(kw1, (gate_channels, gr), dtype=jnp.float32) * 0.1
    b1 = jax.random.normal(kb1, (gr,), dtype=jnp.float32) * 0.1
    w2t = jax.random.normal(kw2, (gr, gate_channels), dtype=jnp.float32) * 0.1
    b2 = jax.random.normal(kb2, (gate_channels,), dtype=jnp.float32) * 0.1

    out = pc_attention(x, w1t, b1, w2t, b2)
    out = jax.block_until_ready(out)

    ref = pc_attention_ref(x, w1t, b1, w2t, b2)
    assert out.shape == (n_voxels, gate_channels, 1), out.shape
    assert jnp.allclose(out, ref, atol=1e-5, rtol=1e-5), "mismatch vs reference"

    # Ragged last-tile check (n_voxels not a multiple of the 8-row tile):
    x2 = jax.random.normal(jax.random.PRNGKey(1),
                           (20, n_points, gate_channels), dtype=jnp.float32)
    out2 = jax.block_until_ready(pc_attention(x2, w1t, b1, w2t, b2))
    ref2 = pc_attention_ref(x2, w1t, b1, w2t, b2)
    assert jnp.allclose(out2, ref2, atol=1e-5, rtol=1e-5), "ragged-tile mismatch"

    print("KERNEL_OK")
</pallas_src>

<mosaic_0001>
module attributes {stable_mosaic.version = 11 : i64} {
  func.func @_pc_attention_kernel(%arg0: i32, %arg1: memref<8x16x32xf32, #tpu.memory_space<vmem>>, %arg2: memref<32x8xf32, #tpu.memory_space<vmem>>, %arg3: memref<1x8xf32, #tpu.memory_space<vmem>>, %arg4: memref<8x32xf32, #tpu.memory_space<vmem>>, %arg5: memref<1x32xf32, #tpu.memory_space<vmem>>, %arg6: memref<8x32xf32, #tpu.memory_space<vmem>>) attributes {dimension_semantics = [#tpu.dimension_semantics<parallel>], iteration_bounds = array<i64: 2>, scalar_prefetch = 0 : i64, scratch_operands = 0 : i64, tpu.core_type = #tpu.core_type<tc>, window_params = [{transform_indices = @transform_0, window_bounds = array<i64: 8, 16, 32>}, {pipeline_mode = #tpu.pipeline_mode<synchronous>, transform_indices = @transform_1, window_bounds = array<i64: 32, 8>}, {pipeline_mode = #tpu.pipeline_mode<synchronous>, transform_indices = @transform_2, window_bounds = array<i64: 1, 8>}, {pipeline_mode = #tpu.pipeline_mode<synchronous>, transform_indices = @transform_3, window_bounds = array<i64: 8, 32>}, {pipeline_mode = #tpu.pipeline_mode<synchronous>, transform_indices = @transform_4, window_bounds = array<i64: 1, 32>}, {transform_indices = @transform_5, window_bounds = array<i64: 8, 32>}]} {
    %c0 = arith.constant 0 : index
    %c0_0 = arith.constant 0 : index
    %c0_1 = arith.constant 0 : index
    %0 = vector.load %arg1[%c0, %c0_0, %c0_1] : memref<8x16x32xf32, #tpu.memory_space<vmem>>, vector<8x16x32xf32>
    %cst = arith.constant dense<0xFF800000> : vector<8x32xf32>
    %1 = vector.multi_reduction <maximumf>, %0, %cst [1] : vector<8x16x32xf32> to vector<8x32xf32>
    %cst_2 = arith.constant dense<0.000000e+00> : vector<8x32xf32>
    %2 = vector.multi_reduction <add>, %0, %cst_2 [1] : vector<8x16x32xf32> to vector<8x32xf32>
    %cst_3 = arith.constant 6.250000e-02 : f32
    %3 = vector.broadcast %cst_3 : f32 to vector<8x32xf32>
    %4 = arith.mulf %2, %3 : vector<8x32xf32>
    %c0_4 = arith.constant 0 : index
    %c0_5 = arith.constant 0 : index
    %5 = vector.load %arg2[%c0_4, %c0_5] : memref<32x8xf32, #tpu.memory_space<vmem>>, vector<32x8xf32>
    %c0_6 = arith.constant 0 : index
    %c0_7 = arith.constant 0 : index
    %6 = vector.load %arg4[%c0_6, %c0_7] : memref<8x32xf32, #tpu.memory_space<vmem>>, vector<8x32xf32>
    %c0_8 = arith.constant 0 : index
    %c0_9 = arith.constant 0 : index
    %7 = vector.load %arg3[%c0_8, %c0_9] : memref<1x8xf32, #tpu.memory_space<vmem>>, vector<1x8xf32>
    %c0_10 = arith.constant 0 : index
    %c0_11 = arith.constant 0 : index
    %8 = vector.load %arg5[%c0_10, %c0_11] : memref<1x32xf32, #tpu.memory_space<vmem>>, vector<1x32xf32>
    %cst_12 = arith.constant dense<0.000000e+00> : vector<8x8xf32>
    %9 = tpu.matmul %1, %5, %cst_12 {dimension_numbers = #tpu.dot_dimension_numbers<[1], [0], [0], [1], [0, 0, 1, 1], [], []>} : vector<8x32xf32>, vector<32x8xf32>, vector<8x8xf32> -> vector<8x8xf32>
    %10 = vector.broadcast %7 : vector<1x8xf32> to vector<8x8xf32>
    %11 = arith.addf %9, %10 : vector<8x8xf32>
    %cst_13 = arith.constant 0.000000e+00 : f32
    %12 = vector.broadcast %cst_13 : f32 to vector<8x8xf32>
    %13 = arith.maximumf %11, %12 : vector<8x8xf32>
    %cst_14 = arith.constant dense<0.000000e+00> : vector<8x8xf32>
    %14 = tpu.matmul %4, %5, %cst_14 {dimension_numbers = #tpu.dot_dimension_numbers<[1], [0], [0], [1], [0, 0, 1, 1], [], []>} : vector<8x32xf32>, vector<32x8xf32>, vector<8x8xf32> -> vector<8x8xf32>
    %15 = vector.broadcast %7 : vector<1x8xf32> to vector<8x8xf32>
    %16 = arith.addf %14, %15 : vector<8x8xf32>
    %cst_15 = arith.constant 0.000000e+00 : f32
    %17 = vector.broadcast %cst_15 : f32 to vector<8x8xf32>
    %18 = arith.maximumf %16, %17 : vector<8x8xf32>
    %19 = arith.addf %13, %18 : vector<8x8xf32>
    %cst_16 = arith.constant dense<0.000000e+00> : vector<8x32xf32>
    %20 = tpu.matmul %19, %6, %cst_16 {dimension_numbers = #tpu.dot_dimension_numbers<[1], [0], [0], [1], [0, 0, 1, 1], [], []>} : vector<8x8xf32>, vector<8x32xf32>, vector<8x32xf32> -> vector<8x32xf32>
    %cst_17 = arith.constant 2.000000e+00 : f32
    %21 = vector.broadcast %cst_17 : f32 to vector<1x32xf32>
    %22 = arith.mulf %21, %8 : vector<1x32xf32>
    %23 = vector.broadcast %22 : vector<1x32xf32> to vector<8x32xf32>
    %24 = arith.addf %20, %23 : vector<8x32xf32>
    %25 = arith.negf %24 : vector<8x32xf32>
    %26 = math.exp %25 : vector<8x32xf32>
    %cst_18 = arith.constant 1.000000e+00 : f32
    %27 = vector.broadcast %cst_18 : f32 to vector<8x32xf32>
    %28 = arith.addf %27, %26 : vector<8x32xf32>
    %29 = arith.divf %27, %28 : vector<8x32xf32>
    %c0_19 = arith.constant 0 : index
    %c0_20 = arith.constant 0 : index
    %30 = vector.load %arg6[%c0_19, %c0_20] : memref<8x32xf32, #tpu.memory_space<vmem>>, vector<8x32xf32>
    tpu.vector_store %arg6[%c0_19, %c0_20], %29 {strides = array<i32>} : memref<8x32xf32, #tpu.memory_space<vmem>>, vector<8x32xf32>,
    return
  }
  func.func @transform_0(%arg0: i32) -> (i32, i32, i32) {
    %c0_i32 = arith.constant 0 : i32
    %c0_i32_0 = arith.constant 0 : i32
    %c0_i32_1 = arith.constant 0 : i32
    return %arg0, %c0_i32, %c0_i32_0 : i32, i32, i32
  }
  func.func @transform_1(%arg0: i32) -> (i32, i32) {
    %c0_i32 = arith.constant 0 : i32
    %c0_i32_0 = arith.constant 0 : i32
    %c0_i32_1 = arith.constant 0 : i32
    return %c0_i32, %c0_i32_0 : i32, i32
  }
  func.func @transform_2(%arg0: i32) -> (i32, i32) {
    %c0_i32 = arith.constant 0 : i32
    %c0_i32_0 = arith.constant 0 : i32
    %c0_i32_1 = arith.constant 0 : i32
    return %c0_i32, %c0_i32_0 : i32, i32
  }
  func.func @transform_3(%arg0: i32) -> (i32, i32) {
    %c0_i32 = arith.constant 0 : i32
    %c0_i32_0 = arith.constant 0 : i32
    %c0_i32_1 = arith.constant 0 : i32
    return %c0_i32, %c0_i32_0 : i32, i32
  }
  func.func @transform_4(%arg0: i32) -> (i32, i32) {
    %c0_i32 = arith.constant 0 : i32
    %c0_i32_0 = arith.constant 0 : i32
    %c0_i32_1 = arith.constant 0 : i32
    return %c0_i32, %c0_i32_0 : i32, i32
  }
  func.func @transform_5(%arg0: i32) -> (i32, i32) {
    %c0_i32 = arith.constant 0 : i32
    %c0_i32_0 = arith.constant 0 : i32
    return %arg0, %c0_i32 : i32, i32
  }
}

</mosaic_0001>

<llo_original>
// kernel: tpu_custom_call.1
$region0: #{tpu_custom_call.1}
  #allocation0 [shape = 'u32[]', space=smem, size = 0x4, offset = 0x4, fixed_abs, tag = 'smem constant byte address 0x4 - core index']
  #allocation1 [shape = 'u32[72,128]{1,0:T(1,128)}', space=vmem, size = 0x9000, scoped, tag = 'internal scratch']
  %s0 = inlined_call_operand.hbm [shape: f32[16,16,32], index: 0, kind: input, shape index: {}]
  %s1 = inlined_call_operand.vmem [shape: f32[32,8], index: 1, kind: input, shape index: {}]
  %s2 = inlined_call_operand.vmem [shape: f32[1,8], index: 2, kind: input, shape index: {}]
  %s3 = inlined_call_operand.vmem [shape: f32[8,32], index: 3, kind: input, shape index: {}]
  %s4 = inlined_call_operand.vmem [shape: f32[1,32], index: 4, kind: input, shape index: {}]
  %s5 = inlined_call_operand.hbm [shape: f32[16,32], index: 5, kind: output, shape index: {}]
  %s6 = sld [smem:[#allocation0]]
  $region57: #{tpu_custom_call.1} parent=0
    _
  %s8 = ssub.s32 1, %s6
  %s9 = scalar_select 0, %s8, %s6
  $region1: #{tpu_custom_call.1} parent=0
    #allocation2 [shape = 'u8[131072]{0}', space=vmem, size = 0x20000, scoped, tag = 'input window, operand 0']
    #allocation3 [shape = 's32[2]{0}', space=sflag, size = 0x8, scoped, tag = 'scoped memory for tpu_custom_call.1']
    #allocation4 [shape = 's32[2]{0}', space=sflag, size = 0x8, scoped, tag = 'scoped memory for tpu_custom_call.1']
    #allocation5 [shape = 'u8[8192]{0}', space=vmem, size = 0x2000, scoped, tag = 'output window, operand 0']
    %10 = vsyncpa [#allocation3], 0
    %s11 = scalar_lea.sflag [#allocation3], 1
    %12 = vsyncpa %s11, 0
    %13 = vsyncpa [#allocation4], 0
    %s14 = scalar_lea.sflag [#allocation4], 1
    %15 = vsyncpa %s14, 0
    loop: start=0, step=1, limit=4
    $region2: #{tpu_custom_call.1} parent=1 // loop_pre_header
      _
    $region3: #{tpu_custom_call.1} parent=1 // loop_header
      %s17 = sphi 0, %s21
      %p18 = scmp.ge.s32.totalorder %s17, 4
      %s27 = sphi 0, %s29
      %s30 = sphi 0, %s27
      %s31 = sphi 0, %s30
      %s47 = sphi 0, %s31
      %s51 = sphi 0, %s51
      %s53 = sphi 0, %s51
      %s54 = sphi 0, %s53
      %s68 = sphi 0, %s54
      %s72 = sphi 0, %s72
      %s74 = sphi 0, %s72
      %s75 = sphi 0, %s74
      %s89 = sphi 0, %s75
      %s93 = sphi 0, %s93
      %s95 = sphi 0, %s93
      %s96 = sphi 0, %s95
      %s110 = sphi 0, %s96
      %s114 = sphi 0, %s114
      %s116 = sphi 0, %s114
      %s117 = sphi 0, %s116
      %s131 = sphi 0, %s117
      %s137 = sphi 0, %s139
      %s140 = sphi 0, %s137
      %s141 = sphi 0, %s140
      %s157 = sphi 0, %s141
    $region4: #{tpu_custom_call.1} parent=1 // loop_header_branch
      %20 = sbr.rel (%p18) target = $region8
    $region5: #{tpu_custom_call.1} parent=1 // loop_body
      %s22 = ssub.s32 %s17, 1
      %s23 = ssub.s32 %s17, 2
      %s24 = sadd.s32 %s17, 1
      %s25 = ssub.s32 %s17, %s24
      %p26 = scmp.eq.s32.totalorder %s25, 0
      %s28 = sadd.s32 %s27, 1
      %s29 = scalar_select %p26, %s27, %s28
      %p32 = pneg %p26
      %p33 = scmp.eq.s32.totalorder %s17, 1
      %p34 = por %p32, %p33
      %p35 = scmp.ne.s32.totalorder %s27, %s30
      %p36 = scmp.eq.s32.totalorder %s17, 0
      %p37 = por %p35, %p36
      %p38 = scmp.ne.s32.totalorder %s27, %s30
      %p39 = scmp.eq.s32.totalorder %s22, 1
      %p40 = por %p38, %p39
      %p41 = scmp.ne.s32.totalorder %s30, %s31
      %p42 = scmp.eq.s32.totalorder %s22, 0
      %p43 = por %p41, %p42
      %p44 = scmp.ne.s32.totalorder %s30, %s31
      %p45 = scmp.eq.s32.totalorder %s23, 1
      %p46 = por %p44, %p45
      %p48 = scmp.ne.s32.totalorder %s31, %s47
      %p49 = scmp.eq.s32.totalorder %s23, 0
      %p50 = por %p48, %p49
      %s52 = sadd.s32 %s51, 1
      %p55 = scmp.eq.s32.totalorder %s17, 1
      %p56 = scmp.ne.s32.totalorder %s51, %s53
      %p57 = scmp.eq.s32.totalorder %s17, 0
      %p58 = por %p56, %p57
      %p59 = scmp.ne.s32.totalorder %s51, %s53
      %p60 = scmp.eq.s32.totalorder %s22, 1
      %p61 = por %p59, %p60
      %p62 = scmp.ne.s32.totalorder %s53, %s54
      %p63 = scmp.eq.s32.totalorder %s22, 0
      %p64 = por %p62, %p63
      %p65 = scmp.ne.s32.totalorder %s53, %s54
      %p66 = scmp.eq.s32.totalorder %s23, 1
      %p67 = por %p65, %p66
      %p69 = scmp.ne.s32.totalorder %s54, %s68
      %p70 = scmp.eq.s32.totalorder %s23, 0
      %p71 = por %p69, %p70
      %s73 = sadd.s32 %s72, 1
      %p76 = scmp.eq.s32.totalorder %s17, 1
      %p77 = scmp.ne.s32.totalorder %s72, %s74
      %p78 = scmp.eq.s32.totalorder %s17, 0
      %p79 = por %p77, %p78
      %p80 = scmp.ne.s32.totalorder %s72, %s74
      %p81 = scmp.eq.s32.totalorder %s22, 1
      %p82 = por %p80, %p81
      %p83 = scmp.ne.s32.totalorder %s74, %s75
      %p84 = scmp.eq.s32.totalorder %s22, 0
      %p85 = por %p83, %p84
      %p86 = scmp.ne.s32.totalorder %s74, %s75
      %p87 = scmp.eq.s32.totalorder %s23, 1
      %p88 = por %p86, %p87
      %p90 = scmp.ne.s32.totalorder %s75, %s89
      %p91 = scmp.eq.s32.totalorder %s23, 0
      %p92 = por %p90, %p91
      %s94 = sadd.s32 %s93, 1
      %p97 = scmp.eq.s32.totalorder %s17, 1
      %p98 = scmp.ne.s32.totalorder %s93, %s95
      %p99 = scmp.eq.s32.totalorder %s17, 0
      %p100 = por %p98, %p99
      %p101 = scmp.ne.s32.totalorder %s93, %s95
      %p102 = scmp.eq.s32.totalorder %s22, 1
      %p103 = por %p101, %p102
      %p104 = scmp.ne.s32.totalorder %s95, %s96
      %p105 = scmp.eq.s32.totalorder %s22, 0
      %p106 = por %p104, %p105
      %p107 = scmp.ne.s32.totalorder %s95, %s96
      %p108 = scmp.eq.s32.totalorder %s23, 1
      %p109 = por %p107, %p108
      %p111 = scmp.ne.s32.totalorder %s96, %s110
      %p112 = scmp.eq.s32.totalorder %s23, 0
      %p113 = por %p111, %p112
      %s115 = sadd.s32 %s114, 1
      %p118 = scmp.eq.s32.totalorder %s17, 1
      %p119 = scmp.ne.s32.totalorder %s114, %s116
      %p120 = scmp.eq.s32.totalorder %s17, 0
      %p121 = por %p119, %p120
      %p122 = scmp.ne.s32.totalorder %s114, %s116
      %p123 = scmp.eq.s32.totalorder %s22, 1
      %p124 = por %p122, %p123
      %p125 = scmp.ne.s32.totalorder %s116, %s117
      %p126 = scmp.eq.s32.totalorder %s22, 0
      %p127 = por %p125, %p126
      %p128 = scmp.ne.s32.totalorder %s116, %s117
      %p129 = scmp.eq.s32.totalorder %s23, 1
      %p130 = por %p128, %p129
      %p132 = scmp.ne.s32.totalorder %s117, %s131
      %p133 = scmp.eq.s32.totalorder %s23, 0
      %p134 = por %p132, %p133
      %s135 = ssub.s32 %s17, %s24
      %p136 = scmp.eq.s32.totalorder %s135, 0
      %s138 = sadd.s32 %s137, 1
      %s139 = scalar_select %p136, %s137, %s138
      %p142 = pneg %p136
      %p143 = scmp.eq.s32.totalorder %s17, 1
      %p144 = por %p142, %p143
      %p145 = scmp.ne.s32.totalorder %s137, %s140
      %p146 = scmp.eq.s32.totalorder %s17, 0
      %p147 = por %p145, %p146
      %p148 = scmp.ne.s32.totalorder %s137, %s140
      %p149 = scmp.eq.s32.totalorder %s22, 1
      %p150 = por %p148, %p149
      %p151 = scmp.ne.s32.totalorder %s140, %s141
      %p152 = scmp.eq.s32.totalorder %s22, 0
      %p153 = por %p151, %p152
      %p154 = scmp.ne.s32.totalorder %s140, %s141
      %p155 = scmp.eq.s32.totalorder %s23, 1
      %p156 = por %p154, %p155
      %p158 = scmp.ne.s32.totalorder %s141, %s157
      %p159 = scmp.eq.s32.totalorder %s23, 0
      %p160 = por %p158, %p159
      %p161 = scmp.le.s32.totalorder 1, %s17
      %p162 = scmp.lt.s32.totalorder %s17, 3
      %p163 = pnand %p161, %p162
      %p164 = pneg %p163
      // Predicated region
      $region9: #{tpu_custom_call.1} parent=5 // pred_check
        _
      $region10: #{tpu_custom_call.1} parent=5 // pred_check_branch
        %166 = sbr.rel (%p163) target = $region12
      $region11: #{tpu_custom_call.1} parent=5 // pred_region
        %s167 = ssub.s32 %s17, 1
        // Predicated region
        $region13: #{tpu_custom_call.1} parent=11 // pred_check
          %p168 = pneg %p64
        $region14: #{tpu_custom_call.1} parent=11 // pred_check_branch
          %170 = sbr.rel (%p168) target = $region16
        $region15: #{tpu_custom_call.1} parent=11 // pred_region
          _
        $region16: #{tpu_custom_call.1} parent=11 // pred_fallthru
          _
        // Predicated region
        $region17: #{tpu_custom_call.1} parent=11 // pred_check
          %p171 = pneg %p85
        $region18: #{tpu_custom_call.1} parent=11 // pred_check_branch
          %173 = sbr.rel (%p171) target = $region20
        $region19: #{tpu_custom_call.1} parent=11 // pred_region
          _
        $region20: #{tpu_custom_call.1} parent=11 // pred_fallthru
          _
        // Predicated region
        $region21: #{tpu_custom_call.1} parent=11 // pred_check
          %p174 = pneg %p106
        $region22: #{tpu_custom_call.1} parent=11 // pred_check_branch
          %176 = sbr.rel (%p174) target = $region24
        $region23: #{tpu_custom_call.1} parent=11 // pred_region
          _
        $region24: #{tpu_custom_call.1} parent=11 // pred_fallthru
          _
        // Predicated region
        $region25: #{tpu_custom_call.1} parent=11 // pred_check
          %p177 = pneg %p127
        $region26: #{tpu_custom_call.1} parent=11 // pred_check_branch
          %179 = sbr.rel (%p177) target = $region28
        $region27: #{tpu_custom_call.1} parent=11 // pred_region
          _
        $region28: #{tpu_custom_call.1} parent=11 // pred_fallthru
          _
      $region12: #{tpu_custom_call.1} parent=5 // pred_fallthru
        _
      %p180 = scmp.lt.s32.totalorder %s17, 2
      // Predicated region
      $region29: #{tpu_custom_call.1} parent=5 // pred_check
        %p181 = pneg %p180
      $region30: #{tpu_custom_call.1} parent=5 // pred_check_branch
        %183 = sbr.rel (%p181) target = $region32
      $region31: #{tpu_custom_call.1} parent=5 // pred_region
        // Predicated region
        $region33: #{tpu_custom_call.1} parent=31 // pred_check
          %p184 = pneg %p37
        $region34: #{tpu_custom_call.1} parent=31 // pred_check_branch
          %186 = sbr.rel (%p184) target = $region36
        $region35: #{tpu_custom_call.1} parent=31 // pred_region
          %s187 = sand.u32 %s27, 1
          %s188 = scalar_lea.sflag [#allocation3], %s187
          %s189 = sand.u32 %s27, 1
          %s190 = smul.addr %s189, 128
          %s191 = scalar_lea.vmem [#allocation2], %s190
          %s192 = smul.u32 8, %s17
          %194 = vsyncadd %s188, 0
          %s195 = smul.addr %s192, 2
          %s196 = smul.addr %s195, 8
          %s197 = scalar_lea.hbm %s0, %s196
          %s198 = sshll.u32 %s197, 4
          %s199 = int_to_ptr.hbm [resolvable:$true] %s198
          %s200 = sshll.u32 %s191, 4
          %s201 = int_to_ptr.vmem [resolvable:$true] %s200
          %206 = dma.hbm_to_vmem [thread:$0]  %s199, 2048, %s201, %s188, 128, 128, 8
        $region36: #{tpu_custom_call.1} parent=31 // pred_fallthru
          _
      $region32: #{tpu_custom_call.1} parent=5 // pred_fallthru
        _
      %p207 = scmp.le.s32.totalorder 1, %s17
      %p208 = scmp.lt.s32.totalorder %s17, 3
      %p209 = pnand %p207, %p208
      %p210 = pneg %p209
      // Predicated region
      $region37: #{tpu_custom_call.1} parent=5 // pred_check
        _
      $region38: #{tpu_custom_call.1} parent=5 // pred_check_branch
        %212 = sbr.rel (%p209) target = $region40
      $region39: #{tpu_custom_call.1} parent=5 // pred_region
        %s213 = ssub.s32 %s17, 1
        %s214 = sand.u32 %s30, 1
        %s215 = scalar_lea.sflag [#allocation3], %s214
        %s216 = sand.u32 %s30, 1
        %s217 = smul.addr %s216, 128
        %s218 = scalar_lea.vmem [#allocation2], %s217
        // Predicated region
        $region41: #{tpu_custom_call.1} parent=39 // pred_check
          %p219 = pneg %p43
        $region42: #{tpu_custom_call.1} parent=39 // pred_check_branch
          %221 = sbr.rel (%p219) target = $region44
        $region43: #{tpu_custom_call.1} parent=39 // pred_region
          %223 = dma.done %s215, 2048
        $region44: #{tpu_custom_call.1} parent=39 // pred_fallthru
          _
        %s224 = sand.u32 %s30, 1
        %s225 = scalar_lea.sflag [#allocation3], %s224
        %s226 = sand.u32 %s30, 1
        %s227 = smul.addr %s226, 128
        %s228 = scalar_lea.vmem [#allocation2], %s227
        %p229 = pneg %p43
        %p230 = pneg %p40
        %p231 = pneg %p64
        %p232 = pneg %p61
        %p233 = pneg %p85
        %p234 = pneg %p82
        %p235 = pneg %p106
        %p236 = pneg %p103
        %p237 = pneg %p127
        %p238 = pneg %p124
        %p239 = pneg %p153
        %p240 = pneg %p150
        %s241 = sand.u32 %s140, 1
        %s242 = scalar_lea.sflag [#allocation4], %s241
        %s243 = sand.u32 %s140, 1
        %s244 = smul.addr %s243, 8
        %s245 = scalar_lea.vmem [#allocation5], %s244
        %s246 = smul.u32 8, %s22
        %v247 = vld [vmem:[%s218] sm:$0xff]
        %v248 = vld [vmem:[%s218 + $0x8] sm:$0xff]
        %v249 = vld [vmem:[%s218 + $0x10] sm:$0xff]
        %v250 = vld [vmem:[%s218 + $0x18] sm:$0xff]
        %v251 = vld [vmem:[%s218 + $0x20] sm:$0xff]
        %v252 = vld [vmem:[%s218 + $0x28] sm:$0xff]
        %v253 = vld [vmem:[%s218 + $0x30] sm:$0xff]
        %v254 = vld [vmem:[%s218 + $0x38] sm:$0xff]
        %v255 = vld [vmem:[%s218 + $0x40] sm:$0xff]
        %v256 = vld [vmem:[%s218 + $0x48] sm:$0xff]
        %v257 = vld [vmem:[%s218 + $0x50] sm:$0xff]
        %v258 = vld [vmem:[%s218 + $0x58] sm:$0xff]
        %v259 = vld [vmem:[%s218 + $0x60] sm:$0xff]
        %v260 = vld [vmem:[%s218 + $0x68] sm:$0xff]
        %v261 = vld [vmem:[%s218 + $0x70] sm:$0xff]
        %v262 = vld [vmem:[%s218 + $0x78] sm:$0xff]
        %vm263 = vcmask 261120
        %v264 = vsel %vm263, %v247, -inf
        %v265 = vsel %vm263, %v248, -inf
        %v266 = vmax.f32 %v264, %v265
        %v267 = vrot.slane %v266, 4
        %v268 = vmax.f32 %v266, %v267
        %v269 = vrot.slane %v268, 2
        %v270 = vmax.f32 %v268, %v269
        %v271 = vrot.slane %v270, 1
        %v272 = vmax.f32 %v270, %v271
        %v273 = vsel %vm263, %v249, -inf
        %v274 = vsel %vm263, %v250, -inf
        %v275 = vmax.f32 %v273, %v274
        %v276 = vrot.slane %v275, 4
        %v277 = vmax.f32 %v275, %v276
        %v278 = vrot.slane %v277, 2
        %v279 = vmax.f32 %v277, %v278
        %v280 = vrot.slane %v279, 1
        %v281 = vmax.f32 %v279, %v280
        %v282 = vsel %vm263, %v251, -inf
        %v283 = vsel %vm263, %v252, -inf
        %v284 = vmax.f32 %v282, %v283
        %v285 = vrot.slane %v284, 4
        %v286 = vmax.f32 %v284, %v285
        %v287 = vrot.slane %v286, 2
        %v288 = vmax.f32 %v286, %v287
        %v289 = vrot.slane %v288, 1
        %v290 = vmax.f32 %v288, %v289
        %v291 = vsel %vm263, %v253, -inf
        %v292 = vsel %vm263, %v254, -inf
        %v293 = vmax.f32 %v291, %v292
        %v294 = vrot.slane %v293, 4
        %v295 = vmax.f32 %v293, %v294
        %v296 = vrot.slane %v295, 2
        %v297 = vmax.f32 %v295, %v296
        %v298 = vrot.slane %v297, 1
        %v299 = vmax.f32 %v297, %v298
        %v300 = vsel %vm263, %v255, -inf
        %v301 = vsel %vm263, %v256, -inf
        %v302 = vmax.f32 %v300, %v301
        %v303 = vrot.slane %v302, 4
        %v304 = vmax.f32 %v302, %v303
        %v305 = vrot.slane %v304, 2
        %v306 = vmax.f32 %v304, %v305
        %v307 = vrot.slane %v306, 1
        %v308 = vmax.f32 %v306, %v307
        %v309 = vsel %vm263, %v257, -inf
        %v310 = vsel %vm263, %v258, -inf
        %v311 = vmax.f32 %v309, %v310
        %v312 = vrot.slane %v311, 4
        %v313 = vmax.f32 %v311, %v312
        %v314 = vrot.slane %v313, 2
        %v315 = vmax.f32 %v313, %v314
        %v316 = vrot.slane %v315, 1
        %v317 = vmax.f32 %v315, %v316
        %v318 = vsel %vm263, %v259, -inf
        %v319 = vsel %vm263, %v260, -inf
        %v320 = vmax.f32 %v318, %v319
        %v321 = vrot.slane %v320, 4
        %v322 = vmax.f32 %v320, %v321
        %v323 = vrot.slane %v322, 2
        %v324 = vmax.f32 %v322, %v323
        %v325 = vrot.slane %v324, 1
        %v326 = vmax.f32 %v324, %v325
        %v327 = vsel %vm263, %v261, -inf
        %v328 = vsel %vm263, %v262, -inf
        %v329 = vmax.f32 %v327, %v328
        %v330 = vrot.slane %v329, 4
        %v331 = vmax.f32 %v329, %v330
        %v332 = vrot.slane %v331, 2
        %v333 = vmax.f32 %v331, %v332
        %v334 = vrot.slane %v333, 1
        %v335 = vmax.f32 %v333, %v334
        %v336 = vsel %vm263, %v247, 0.0
        %v337 = vsel %vm263, %v248, 0.0
        %v338 = vadd.f32 %v336, %v337
        %v339 = vrot.slane %v338, 4
        %v340 = vadd.f32 %v338, %v339
        %v341 = vrot.slane %v340, 2
        %v342 = vadd.f32 %v340, %v341
        %v343 = vrot.slane %v342, 1
        %v344 = vadd.f32 %v342, %v343
        %v345 = vsel %vm263, %v249, 0.0
        %v346 = vsel %vm263, %v250, 0.0
        %v347 = vadd.f32 %v345, %v346
        %v348 = vrot.slane %v347, 4
        %v349 = vadd.f32 %v347, %v348
        %v350 = vrot.slane %v349, 2
        %v351 = vadd.f32 %v349, %v350
        %v352 = vrot.slane %v351, 1
        %v353 = vadd.f32 %v351, %v352
        %v354 = vsel %vm263, %v251, 0.0
        %v355 = vsel %vm263, %v252, 0.0
        %v356 = vadd.f32 %v354, %v355
        %v357 = vrot.slane %v356, 4
        %v358 = vadd.f32 %v356, %v357
        %v359 = vrot.slane %v358, 2
        %v360 = vadd.f32 %v358, %v359
        %v361 = vrot.slane %v360, 1
        %v362 = vadd.f32 %v360, %v361
        %v363 = vsel %vm263, %v253, 0.0
        %v364 = vsel %vm263, %v254, 0.0
        %v365 = vadd.f32 %v363, %v364
        %v366 = vrot.slane %v365, 4
        %v367 = vadd.f32 %v365, %v366
        %v368 = vrot.slane %v367, 2
        %v369 = vadd.f32 %v367, %v368
        %v370 = vrot.slane %v369, 1
        %v371 = vadd.f32 %v369, %v370
        %v372 = vsel %vm263, %v255, 0.0
        %v373 = vsel %vm263, %v256, 0.0
        %v374 = vadd.f32 %v372, %v373
        %v375 = vrot.slane %v374, 4
        %v376 = vadd.f32 %v374, %v375
        %v377 = vrot.slane %v376, 2
        %v378 = vadd.f32 %v376, %v377
        %v379 = vrot.slane %v378, 1
        %v380 = vadd.f32 %v378, %v379
        %v381 = vsel %vm263, %v257, 0.0
        %v382 = vsel %vm263, %v258, 0.0
        %v383 = vadd.f32 %v381, %v382
        %v384 = vrot.slane %v383, 4
        %v385 = vadd.f32 %v383, %v384
        %v386 = vrot.slane %v385, 2
        %v387 = vadd.f32 %v385, %v386
        %v388 = vrot.slane %v387, 1
        %v389 = vadd.f32 %v387, %v388
        %v390 = vsel %vm263, %v259, 0.0
        %v391 = vsel %vm263, %v260, 0.0
        %v392 = vadd.f32 %v390, %v391
        %v393 = vrot.slane %v392, 4
        %v394 = vadd.f32 %v392, %v393
        %v395 = vrot.slane %v394, 2
        %v396 = vadd.f32 %v394, %v395
        %v397 = vrot.slane %v396, 1
        %v398 = vadd.f32 %v396, %v397
        %v399 = vsel %vm263, %v261, 0.0
        %v400 = vsel %vm263, %v262, 0.0
        %v401 = vadd.f32 %v399, %v400
        %v402 = vrot.slane %v401, 4
        %v403 = vadd.f32 %v401, %v402
        %v404 = vrot.slane %v403, 2
        %v405 = vadd.f32 %v403, %v404
        %v406 = vrot.slane %v405, 1
        %v407 = vadd.f32 %v405, %v406
        %v408 = vmul.f32 %v344, 0.0625
        %v409 = vmul.f32 %v353, 0.0625
        %v410 = vmul.f32 %v362, 0.0625
        %v411 = vmul.f32 %v371, 0.0625
        %v412 = vmul.f32 %v380, 0.0625
        %v413 = vmul.f32 %v389, 0.0625
        %v414 = vmul.f32 %v398, 0.0625
        %v415 = vmul.f32 %v407, 0.0625
        %v416 = vld [vmem:[%s1] sm:$0xff]
        %v417 = vld [vmem:[%s1 + $0x8] sm:$0xff]
        %v418 = vld [vmem:[%s1 + $0x10] sm:$0xff]
        %v419 = vld [vmem:[%s1 + $0x18] sm:$0xff]
        %v420 = vld [vmem:[%s3] sm:$0xff]
        %v421 = vld [vmem:[%s2] sm:$0x1]
        %v422 = vld [vmem:[%s4] sm:$0x1]
        %v424 = vperm.slane %v421, 0
        %vm434 = vcmask 1041409
        %v435 = vsel %vm434, %v281, %v272
        %vm436 = vcmask 1042434
        %v437 = vsel %vm436, %v290, %v435
        %vm438 = vcmask 1043459
        %v439 = vsel %vm438, %v299, %v437
        %vm440 = vcmask 1044484
        %v441 = vsel %vm440, %v308, %v439
        %vm442 = vcmask 1045509
        %v443 = vsel %vm442, %v317, %v441
        %vm444 = vcmask 1046534
        %v445 = vsel %vm444, %v326, %v443
        %vm446 = vcmask 1047559
        %v447 = vsel %vm446, %v335, %v445
        %v448 = vsel %vm263, %v447, 0
        %450 = vmatpush.msra.mxu0 0.0
        %451 = vmatpush.msra.mxu0 0.0
        %452 = vmatpush.msra.mxu0 0.0
        %453 = vmatpush.msra.mxu0 0.0
        %454 = vmatpush.msra.mxu0 0.0
        %455 = vmatpush.msra.mxu0 0.0
        %456 = vmatpush.msra.mxu0 0.0
        %457 = vmatpush.msra.mxu0 0.0
        %458 = vmatpush.msra.mxu0 0.0
        %459 = vmatpush.msra.mxu0 0.0
        %460 = vmatpush.msra.mxu0 0.0
        %461 = vmatpush.msra.mxu0 0.0
        %462 = vmatpush.msra.mxu0 %v419
        %463 = vmatpush.msra.mxu0 %v418
        %464 = vmatpush.msra.mxu0 %v417
        %465 = vmatpush.msra.mxu0 %v416
        %466 = vmatmul.f32.gmra.mxu0 %v448
        %v467 = vpop.f32.mrf.mxu0
        %v468 = vadd.f32 %v424, %v467
        %469 = vdwg.mxu0
        %v470 = vmax.f32 %v468, 0.0
        %v479 = vsel %vm434, %v409, %v408
        %v480 = vsel %vm436, %v410, %v479
        %v481 = vsel %vm438, %v411, %v480
        %v482 = vsel %vm440, %v412, %v481
        %v483 = vsel %vm442, %v413, %v482
        %v484 = vsel %vm444, %v414, %v483
        %v485 = vsel %vm446, %v415, %v484
        %v486 = vsel %vm263, %v485, 0
        %488 = vmatpush.msra.mxu0 0.0
        %489 = vmatpush.msra.mxu0 0.0
        %490 = vmatpush.msra.mxu0 0.0
        %491 = vmatpush.msra.mxu0 0.0
        %492 = vmatpush.msra.mxu0 0.0
        %493 = vmatpush.msra.mxu0 0.0
        %494 = vmatpush.msra.mxu0 0.0
        %495 = vmatpush.msra.mxu0 0.0
        %496 = vmatpush.msra.mxu0 0.0
        %497 = vmatpush.msra.mxu0 0.0
        %498 = vmatpush.msra.mxu0 0.0
        %499 = vmatpush.msra.mxu0 0.0
        %500 = vmatpush.msra.mxu0 %v419
        %501 = vmatpush.msra.mxu0 %v418
        %502 = vmatpush.msra.mxu0 %v417
        %503 = vmatpush.msra.mxu0 %v416
        %504 = vmatmul.f32.gmra.mxu0 %v486
        %v505 = vpop.f32.mrf.mxu0
        %v506 = vadd.f32 %v424, %v505
        %507 = vdwg.mxu0
        %v508 = vmax.f32 %v506, 0.0
        %v509 = vadd.f32 %v470, %v508
        %v510 = vmul.f32 %v422, 2.0
        %v512 = vperm.slane %v510, 0
        %vm514 = vcmask 64512
        %v516 = vsel %vm514, %v509, 0
        %518 = vmatpush.msra.mxu0 0.0
        %519 = vmatpush.msra.mxu0 0.0
        %520 = vmatpush.msra.mxu0 0.0
        %521 = vmatpush.msra.mxu0 0.0
        %522 = vmatpush.msra.mxu0 0.0
        %523 = vmatpush.msra.mxu0 0.0
        %524 = vmatpush.msra.mxu0 0.0
        %525 = vmatpush.msra.mxu0 0.0
        %526 = vmatpush.msra.mxu0 0.0
        %527 = vmatpush.msra.mxu0 0.0
        %528 = vmatpush.msra.mxu0 0.0
        %529 = vmatpush.msra.mxu0 0.0
        %530 = vmatpush.msra.mxu0 0.0
        %531 = vmatpush.msra.mxu0 0.0
        %532 = vmatpush.msra.mxu0 0.0
        %533 = vmatpush.msra.mxu0 %v420
        %534 = vmatmul.f32.gmra.mxu0 %v516
        %v535 = vpop.f32.mrf.mxu0
        %v536 = vadd.f32 %v512, %v535
        %537 = vdwg.mxu0
        %v538 = vxor.u32 %v536, 2147483648
        %v539 = vmul.f32 %v538, 1.442695
        %v540 = vpow.pop %v539
        %v541 = vadd.f32 %v540, 1.0
        %v542 = vrcp.pop %v541
        %v543 = vmul.f32 %v541, %v542
        %v544 = vsub.f32 1.0, %v543
        %v545 = vmul.f32 %v542, %v544
        %v546 = vadd.f32 %v542, %v545
        %vm547 = vweird.f32 %v541
        %vm548 = vweird.f32 %v542
        %vm549 = vmor %vm547, %vm548
        %v550 = vsel %vm549, %v542, %v546
        %v551 = vand.u32 2147483647, %v541
        %vm552 = vcmp.eq.f32.partialorder %v551, 8.507059e+37
        %v553 = vand.u32 %v541, 2147483648
        %v554 = vor.u32 1.1754944e-38, %v553
        %v555 = vsel %vm552, %v554, %v550
        %v556 = vmul.f32 1.0, %v555
        %557 = vst.msk [vmem:[%s245] sm:$0xff] %vm263, %v556
        %s558 = sand.u32 %s140, 1
        %s559 = scalar_lea.sflag [#allocation4], %s558
        %s560 = sand.u32 %s140, 1
        %s561 = smul.addr %s560, 8
        %s562 = scalar_lea.vmem [#allocation5], %s561
        // Predicated region
        $region45: #{tpu_custom_call.1} parent=39 // pred_check
          %p563 = pneg %p150
        $region46: #{tpu_custom_call.1} parent=39 // pred_check_branch
          %565 = sbr.rel (%p563) target = $region48
        $region47: #{tpu_custom_call.1} parent=39 // pred_region
          %567 = vsyncadd %s559, 0
          %s568 = smul.addr %s22, 8
          %s569 = scalar_lea.hbm %s5, %s568
          %s571 = sshll.u32 %s562, 4
          %s572 = int_to_ptr.vmem [resolvable:$true] %s571
          %s573 = sshll.u32 %s569, 4
          %s574 = int_to_ptr.hbm [resolvable:$true] %s573
          %576 = dma.vmem_to_hbm [thread:$0]  %s572, 128, %s574, %s559
        $region48: #{tpu_custom_call.1} parent=39 // pred_fallthru
          _
      $region40: #{tpu_custom_call.1} parent=5 // pred_fallthru
        _
      %p577 = scmp.le.s32.totalorder 2, %s17
      // Predicated region
      $region49: #{tpu_custom_call.1} parent=5 // pred_check
        %p578 = pneg %p577
      $region50: #{tpu_custom_call.1} parent=5 // pred_check_branch
        %580 = sbr.rel (%p578) target = $region52
      $region51: #{tpu_custom_call.1} parent=5 // pred_region
        %s581 = ssub.s32 %s17, 2
        // Predicated region
        $region53: #{tpu_custom_call.1} parent=51 // pred_check
          %p582 = pneg %p156
        $region54: #{tpu_custom_call.1} parent=51 // pred_check_branch
          %584 = sbr.rel (%p582) target = $region56
        $region55: #{tpu_custom_call.1} parent=51 // pred_region
          %s585 = sand.u32 %s141, 1
          %s586 = scalar_lea.sflag [#allocation4], %s585
          %s587 = sand.u32 %s141, 1
          %s588 = smul.addr %s587, 8
          %s589 = scalar_lea.vmem [#allocation5], %s588
          %591 = dma.done %s586, 128
        $region56: #{tpu_custom_call.1} parent=51 // pred_fallthru
          _
      $region52: #{tpu_custom_call.1} parent=5 // pred_fallthru
        _
    $region6: #{tpu_custom_call.1} parent=1 // loop_footer
      %s21 = sadd.s32 1, %s17
    $region7: #{tpu_custom_call.1} parent=1 // loop_footer_branch
      %16 = sbr.rel target = $region3
    $region8: #{tpu_custom_call.1} parent=1 // loop_exit
      _
    %592 = vsyncpa [#allocation3], 1
    %s593 = scalar_lea.sflag [#allocation3], 1
    %594 = vsyncpa %s593, 1
    %595 = vsyncpa [#allocation4], 1
    %s596 = scalar_lea.sflag [#allocation4], 1
    %597 = vsyncpa %s596, 1

</llo_original>
